<compile_context>
chip_gen: v7x
topology: tpu7x:2x2x1
jax: 0.10.0
libtpu: 0.0.40
codegen_flags: <defaults>
</compile_context>

<pallas_src>
import jax
import jax.numpy as jnp
from jax.experimental import pallas as pl
from jax.experimental.pallas import tpu as pltpu


OUT_C = 128      # every branch ends at 128 channels
CIN_MAX = 16     # widest branch input (cpf); npf/vtx are zero-padded up to this
BN_EPS = 1e-3    # the PyTorch module constructs every BatchNorm1d with eps=0.001


# ---------------------------------------------------------------------------
# Kernel (one row-block = TR flattened batch*seq positions of one branch)
# ---------------------------------------------------------------------------
def _fused_kernel(bid_ref, x_ref, w1_ref, wsw_ref, w3_ref, pA_ref, pB_ref, o_ref):
    """x_ref:   (TR, 16)        input rows (zero-padded channels), matmul dtype
    w1_ref:  (1, 16, 64)      conv1 weight, BN0 folded, padded rows are zero
    wsw_ref: (1, 64, 256)     [Wsc | W2] with the BN2a∘BN1a affine folded in
    w3_ref:  (1, 128, 128)    conv3 weight
    pA_ref:  (1, 8, 64)       row 0: b1 (BN0-folded conv1 bias)
    pB_ref:  (1, 16, 128)     rows: [bsc_f, b2_f, A, B, C, b3, D, E, F]
        sc  = ReLU(msw[:, :128] + bsc_f)
        h2a = ReLU(msw[:, 128:] + b2_f)
        h2  = sc*A + h2a*B + C          (BN_sc, BN1b, BN2b folded)
        h3a = ReLU(h2 @ W3 + b3)
        out = h2*D + h3a*E + F          (BN1c, BN2c folded)
    o_ref:   (TR, 128)
    """
    del bid_ref  # only consumed by the index_maps
    mm = x_ref.dtype
    pA = pA_ref[0]            # (8, 64)
    pB = pB_ref[0]            # (16, 128)

    # Stage 1: Cin -> 64.  BN0 and the post-ReLU BN2a∘BN1a affine are folded
    # into the weights by the wrapper, so only bias + ReLU remain here.
    m1 = jnp.dot(x_ref[...], w1_ref[0], preferred_element_type=jnp.float32)
    h1 = jnp.maximum(m1 + pA[0:1, :], 0.0)

    # Stage 2: fused skip-path (64->128) and conv2 (64->128) as one 64->256
    # matmul (fills the 256-wide MXU); split at the 128-lane tile boundary.
    msw = jnp.dot(h1.astype(mm), wsw_ref[0], preferred_element_type=jnp.float32)
    sc = jnp.maximum(msw[:, :OUT_C] + pB[0:1, :], 0.0)
    h2a = jnp.maximum(msw[:, OUT_C:] + pB[1:2, :], 0.0)
    h2 = sc * pB[2:3, :] + h2a * pB[3:4, :] + pB[4:5, :]

    # Stage 3: conv3 (128 -> 128), residual with h2, BN1c/BN2c folded.
    m3 = jnp.dot(h2.astype(mm), w3_ref[0], preferred_element_type=jnp.float32)
    h3a = jnp.maximum(m3 + pB[5:6, :], 0.0)
    h3 = h2 * pB[6:7, :] + h3a * pB[7:8, :] + pB[8:9, :]

    o_ref[...] = h3.astype(o_ref.dtype)


# ---------------------------------------------------------------------------
# Parameter folding (wrapper-side, one-time; hoist out of the forward path)
# ---------------------------------------------------------------------------
def _fold_bn(bn):
    """BatchNorm1d (eval mode) -> per-channel (scale, shift)."""
    scale = bn["gamma"] / jnp.sqrt(bn["var"] + BN_EPS)
    shift = bn["beta"] - bn["mean"] * scale
    return scale, shift


def _fold_branch(p, matmul_dtype):
    """Fold all BNs of one branch into weights / packed affine vectors.

    Weights are expected as (Cin, Cout); from a torch Conv1d weight of shape
    (Cout, Cin, 1) this is w[:, :, 0].T.
    """
    # BN0 folded directly into conv1 weight/bias; pad channels to CIN_MAX.
    s0, t0 = _fold_bn(p["bn0"])
    w1 = p["w1"] * s0[:, None]
    b1 = t0 @ p["w1"] + p["b1"]
    cin = w1.shape[0]
    w1 = jnp.pad(w1, ((0, CIN_MAX - cin), (0, 0)))

    # conv1 (skip=False): BN2a(BN1a(.)) is one affine; fold it into the
    # downstream weights (Wsc, W2) and their biases -> zero runtime cost.
    s1a, t1a = _fold_bn(p["bn1a"])
    s2a, t2a = _fold_bn(p["bn2a"])
    sa, ta = s2a * s1a, s2a * t1a + t2a

    wsc = p["wsc"] * sa[:, None]
    bsc = p["bsc"] + ta @ p["wsc"]
    w2 = p["w2"] * sa[:, None]
    b2 = p["b2"] + ta @ p["w2"]
    wsw = jnp.concatenate([wsc, w2], axis=1)          # (64, 256)

    ssc, tsc = _fold_bn(p["bnsc"])
    s1b, t1b = _fold_bn(p["bn1b"])
    s2b, t2b = _fold_bn(p["bn2b"])
    s1c, t1c = _fold_bn(p["bn1c"])
    s2c, t2c = _fold_bn(p["bn2c"])

    # h2 = (sc_relu*ssc + tsc + h2a_relu*s1b + t1b)*s2b + t2b
    a_sc = ssc * s2b
    a_h2 = s1b * s2b
    t_h2 = (tsc + t1b) * s2b + t2b
    # h3 = (h2 + h3a_relu*s1c + t1c)*s2c + t2c
    d_skip = s2c
    e_h3 = s1c * s2c
    f_h3 = t1c * s2c + t2c

    pA = jnp.zeros((8, 64), jnp.float32).at[0].set(b1)
    rows = jnp.stack([bsc, b2, a_sc, a_h2, t_h2, p["b3"], d_skip, e_h3, f_h3],
                     axis=0)
    pB = jnp.zeros((16, OUT_C), jnp.float32).at[:9, :].set(rows)

    return dict(w1=w1.astype(matmul_dtype), wsw=wsw.astype(matmul_dtype),
                w3=p["w3"].astype(matmul_dtype), pA=pA, pB=pB)


def fold_input_process_params(cpf_params, npf_params, vtx_params,
                              *, matmul_dtype=jnp.bfloat16):
    """Fold + stack all three branches (leading branch axis).  Call once."""
    folded = [_fold_branch(p, matmul_dtype)
              for p in (cpf_params, npf_params, vtx_params)]
    stack = lambda k: jnp.stack([f[k] for f in folded], axis=0)
    return dict(w1=stack("w1"), wsw=stack("wsw"), w3=stack("w3"),
                pA=stack("pA"), pB=stack("pB"))


# ---------------------------------------------------------------------------
# Pallas wrapper: one fused launch for all three branches
# ---------------------------------------------------------------------------
def _round_up(n, m):
    return ((n + m - 1) // m) * m


def input_process(cpf, npf, vtx, pxl, folded, *, block_rows=2048,
                  out_dtype=jnp.float32):
    """InputProcess.forward (eval mode).  Returns (cpf, npf, vtx), each (B, S, 128).

    block_rows: rows (flattened batch*seq positions) per grid step; raised to
    2048 so per-step pipeline overhead is amortized and the (TR, 128) output
    store stream stays lane-dense.  Going beyond ~4096 would need
    vmem_limit_bytes in CompilerParams; not needed here.
    out_dtype: set to jnp.bfloat16 to halve output HBM traffic (v5e/v6e) if the
    downstream transformer accepts bf16.
    """
    del pxl  # unused by the PyTorch forward as well
    mm_dtype = folded["w1"].dtype

    xs = (cpf, npf, vtx)
    shapes = [x.shape for x in xs]
    ns = [s[0] * s[1] for s in shapes]
    # Shrink the row tile for tiny inputs; keep it a multiple of 16 sublanes.
    TR = min(_round_up(block_rows, 16), _round_up(max(ns), 16))

    segs, bids, starts = [], [], []
    total = 0
    for b, x in enumerate(xs):
        Bn, S, C = x.shape
        assert C <= CIN_MAX
        n = Bn * S
        nblk = (n + TR - 1) // TR
        x2d = x.reshape(n, C).astype(mm_dtype)          # free row-major reshape
        x2d = jnp.pad(x2d, ((0, nblk * TR - n), (0, CIN_MAX - C)))
        segs.append(x2d)
        starts.append(total)
        total += nblk * TR
        bids.extend([b] * nblk)

    x_all = jnp.concatenate(segs, axis=0)               # (total, 16)
    branch_id = jnp.asarray(bids, dtype=jnp.int32)      # per-block branch index
    nblocks = len(bids)

    out = pl.pallas_call(
        _fused_kernel,
        out_shape=jax.ShapeDtypeStruct((total, OUT_C), out_dtype),
        grid_spec=pltpu.PrefetchScalarGridSpec(
            num_scalar_prefetch=1,
            grid=(nblocks,),
            in_specs=[
                pl.BlockSpec((TR, CIN_MAX), lambda i, bid: (i, 0)),          # x rows
                pl.BlockSpec((1, CIN_MAX, 64), lambda i, bid: (bid[i], 0, 0)),    # W1
                pl.BlockSpec((1, 64, 2 * OUT_C), lambda i, bid: (bid[i], 0, 0)),  # [Wsc|W2]
                pl.BlockSpec((1, OUT_C, OUT_C), lambda i, bid: (bid[i], 0, 0)),   # W3
                pl.BlockSpec((1, 8, 64), lambda i, bid: (bid[i], 0, 0)),          # pA
                pl.BlockSpec((1, 16, OUT_C), lambda i, bid: (bid[i], 0, 0)),      # pB
            ],
            out_specs=pl.BlockSpec((TR, OUT_C), lambda i, bid: (i, 0)),
        ),
        compiler_params=pltpu.CompilerParams(
            dimension_semantics=("parallel",)),
    )(branch_id, x_all, folded["w1"], folded["wsw"], folded["w3"],
      folded["pA"], folded["pB"])

    outs = []
    for (Bn, S, _), n, st in zip(shapes, ns, starts):
        outs.append(out[st:st + n].reshape(Bn, S, OUT_C))
    return tuple(outs)


# ---------------------------------------------------------------------------
# Pure-JAX reference (mirrors the PyTorch forward, eval mode, channels-last)
# ---------------------------------------------------------------------------
def _bn_ref(x, bn):
    return (x - bn["mean"]) / jnp.sqrt(bn["var"] + BN_EPS) * bn["gamma"] + bn["beta"]


def _branch_ref(x, p):
    x = _bn_ref(x, p["bn0"])
    h = jax.nn.relu(jnp.einsum("bsc,cd->bsd", x, p["w1"]) + p["b1"])
    h1 = _bn_ref(_bn_ref(h, p["bn1a"]), p["bn2a"])                       # conv1, skip=False
    sc = _bn_ref(jax.nn.relu(jnp.einsum("bsc,cd->bsd", h1, p["wsc"]) + p["bsc"]),
                 p["bnsc"])
    h = _bn_ref(jax.nn.relu(jnp.einsum("bsc,cd->bsd", h1, p["w2"]) + p["b2"]),
                p["bn1b"])
    h2 = _bn_ref(sc + h, p["bn2b"])                                      # conv2, skip=True
    h = _bn_ref(jax.nn.relu(jnp.einsum("bsc,cd->bsd", h2, p["w3"]) + p["b3"]),
                p["bn1c"])
    h3 = _bn_ref(h2 + h, p["bn2c"])                                      # conv3, skip=True
    return h3


def input_process_ref(cpf, npf, vtx, pxl, cpf_params, npf_params, vtx_params):
    del pxl
    return (_branch_ref(cpf, cpf_params),
            _branch_ref(npf, npf_params),
            _branch_ref(vtx, vtx_params))


# ---------------------------------------------------------------------------
# Deterministic synthetic parameters
# ---------------------------------------------------------------------------
def _make_bn(key, n):
    k1, k2, k3, k4 = jax.random.split(key, 4)
    return dict(
        gamma=1.0 + 0.1 * jax.random.normal(k1, (n,), jnp.float32),
        beta=0.1 * jax.random.normal(k2, (n,), jnp.float32),
        mean=0.1 * jax.random.normal(k3, (n,), jnp.float32),
        var=jnp.abs(jax.random.normal(k4, (n,), jnp.float32)) + 0.5,
    )


def make_branch_params(key, cin):
    ks = jax.random.split(key, 16)
    def w(k, shape, scale=0.1):
        return scale * jax.random.normal(k, shape, jnp.float32)
    return dict(
        bn0=_make_bn(ks[0], cin),
        w1=w(ks[1], (cin, 64)), b1=w(ks[2], (64,)),
        bn1a=_make_bn(ks[3], 64), bn2a=_make_bn(ks[4], 64),
        wsc=w(ks[5], (64, OUT_C)), bsc=w(ks[6], (OUT_C,)),
        bnsc=_make_bn(ks[7], OUT_C),
        w2=w(ks[8], (64, OUT_C)), b2=w(ks[9], (OUT_C,)),
        bn1b=_make_bn(ks[10], OUT_C), bn2b=_make_bn(ks[11], OUT_C),
        w3=w(ks[12], (OUT_C, OUT_C)), b3=w(ks[13], (OUT_C,)),
        bn1c=_make_bn(ks[14], OUT_C), bn2c=_make_bn(ks[15], OUT_C),
    )


if __name__ == "__main__":
    key = jax.random.PRNGKey(0)
    kcx, knx, kvx, kcp, knp, kvp = jax.random.split(key, 6)

    B = 2
    cpf = jax.random.normal(kcx, (B, 16, 16), jnp.float32)   # (B, S=16, 16 feats)
    npf = jax.random.normal(knx, (B, 8, 8), jnp.float32)     # (B, S=8,   8 feats)
    vtx = jax.random.normal(kvx, (B, 8, 14), jnp.float32)    # (B, S=8,  14 feats)
    pxl = jnp.zeros((B, 1), jnp.float32)                     # unused, as in PyTorch

    cpf_params = make_branch_params(kcp, 16)
    npf_params = make_branch_params(knp, 8)
    vtx_params = make_branch_params(kvp, 14)

    # Fold once, outside the forward path (in production: jit/cache this).
    folded_f32 = fold_input_process_params(cpf_params, npf_params, vtx_params,
                                           matmul_dtype=jnp.float32)
    folded_bf16 = fold_input_process_params(cpf_params, npf_params, vtx_params,
                                            matmul_dtype=jnp.bfloat16)

    refs = input_process_ref(cpf, npf, vtx, pxl,
                             cpf_params, npf_params, vtx_params)

    # f32 matmul path: strict check against the pure-JAX reference.
    outs_f32 = jax.block_until_ready(input_process(cpf, npf, vtx, pxl, folded_f32))
    for name, o, r in zip(("cpf", "npf", "vtx"), outs_f32, refs):
        assert o.shape == r.shape and o.shape[-1] == OUT_C
        assert jnp.allclose(o, r, atol=5e-4, rtol=5e-4), f"{name} f32 mismatch vs reference"

    # Default bf16-matmul-input path (f32 accumulation + f32 VPU math): loose
    # tolerance that only reflects bf16 input rounding, not kernel structure.
    outs = jax.block_until_ready(input_process(cpf, npf, vtx, pxl, folded_bf16))
    for name, o, r in zip(("cpf", "npf", "vtx"), outs, refs):
        assert o.shape == r.shape and o.shape[-1] == OUT_C
        assert jnp.allclose(o, r, atol=1e-1, rtol=1e-1), f"{name} bf16 mismatch vs reference"

    print("KERNEL_OK")
</pallas_src>

<mosaic_0001>
module attributes {stable_mosaic.version = 11 : i64} {
  func.func @_fused_kernel(%arg0: i32, %arg1: memref<3xi32, #tpu.memory_space<smem>>, %arg2: memref<32x16xf32, #tpu.memory_space<vmem>>, %arg3: memref<1x16x64xf32, #tpu.memory_space<vmem>>, %arg4: memref<1x64x256xf32, #tpu.memory_space<vmem>>, %arg5: memref<1x128x128xf32, #tpu.memory_space<vmem>>, %arg6: memref<1x8x64xf32, #tpu.memory_space<vmem>>, %arg7: memref<1x16x128xf32, #tpu.memory_space<vmem>>, %arg8: memref<32x128xf32, #tpu.memory_space<vmem>>) attributes {dimension_semantics = [#tpu.dimension_semantics<parallel>], iteration_bounds = array<i64: 3>, scalar_prefetch = 1 : i64, scratch_operands = 0 : i64, tpu.core_type = #tpu.core_type<tc>, window_params = [{transform_indices = @transform_0, window_bounds = array<i64: 32, 16>}, {transform_indices = @transform_1, window_bounds = array<i64: 1, 16, 64>}, {transform_indices = @transform_2, window_bounds = array<i64: 1, 64, 256>}, {transform_indices = @transform_3, window_bounds = array<i64: 1, 128, 128>}, {transform_indices = @transform_4, window_bounds = array<i64: 1, 8, 64>}, {transform_indices = @transform_5, window_bounds = array<i64: 1, 16, 128>}, {transform_indices = @transform_6, window_bounds = array<i64: 32, 128>}]} {
    %c0 = arith.constant 0 : index
    %c0_0 = arith.constant 0 : index
    %c0_1 = arith.constant 0 : index
    %0 = vector.load %arg6[%c0, %c0_0, %c0_1] : memref<1x8x64xf32, #tpu.memory_space<vmem>>, vector<1x8x64xf32>
    %1 = vector.shape_cast %0 : vector<1x8x64xf32> to vector<8x64xf32>
    %c0_2 = arith.constant 0 : index
    %c0_3 = arith.constant 0 : index
    %c0_4 = arith.constant 0 : index
    %2 = vector.load %arg7[%c0_2, %c0_3, %c0_4] : memref<1x16x128xf32, #tpu.memory_space<vmem>>, vector<1x16x128xf32>
    %3 = vector.shape_cast %2 : vector<1x16x128xf32> to vector<16x128xf32>
    %c0_5 = arith.constant 0 : index
    %c0_6 = arith.constant 0 : index
    %4 = vector.load %arg2[%c0_5, %c0_6] : memref<32x16xf32, #tpu.memory_space<vmem>>, vector<32x16xf32>
    %c0_7 = arith.constant 0 : index
    %c0_8 = arith.constant 0 : index
    %c0_9 = arith.constant 0 : index
    %5 = vector.load %arg3[%c0_7, %c0_8, %c0_9] : memref<1x16x64xf32, #tpu.memory_space<vmem>>, vector<1x16x64xf32>
    %6 = vector.shape_cast %5 : vector<1x16x64xf32> to vector<16x64xf32>
    %cst = arith.constant dense<0.000000e+00> : vector<32x64xf32>
    %7 = tpu.matmul %4, %6, %cst {dimension_numbers = #tpu.dot_dimension_numbers<[1], [0], [0], [1], [0, 0, 1, 1], [], []>} : vector<32x16xf32>, vector<16x64xf32>, vector<32x64xf32> -> vector<32x64xf32>
    %8 = vector.extract_strided_slice %1 {offsets = [0, 0], sizes = [1, 64], strides = [1, 1]} : vector<8x64xf32> to vector<1x64xf32>
    %9 = vector.broadcast %8 : vector<1x64xf32> to vector<32x64xf32>
    %10 = arith.addf %7, %9 : vector<32x64xf32>
    %cst_10 = arith.constant 0.000000e+00 : f32
    %11 = vector.broadcast %cst_10 : f32 to vector<32x64xf32>
    %12 = arith.maximumf %10, %11 : vector<32x64xf32>
    %c0_11 = arith.constant 0 : index
    %c0_12 = arith.constant 0 : index
    %c0_13 = arith.constant 0 : index
    %13 = vector.load %arg4[%c0_11, %c0_12, %c0_13] : memref<1x64x256xf32, #tpu.memory_space<vmem>>, vector<1x64x256xf32>
    %14 = vector.shape_cast %13 : vector<1x64x256xf32> to vector<64x256xf32>
    %cst_14 = arith.constant dense<0.000000e+00> : vector<32x256xf32>
    %15 = tpu.matmul %12, %14, %cst_14 {dimension_numbers = #tpu.dot_dimension_numbers<[1], [0], [0], [1], [0, 0, 1, 1], [], []>} : vector<32x64xf32>, vector<64x256xf32>, vector<32x256xf32> -> vector<32x256xf32>
    %16 = vector.extract_strided_slice %15 {offsets = [0, 0], sizes = [32, 128], strides = [1, 1]} : vector<32x256xf32> to vector<32x128xf32>
    %17 = vector.extract_strided_slice %3 {offsets = [0, 0], sizes = [1, 128], strides = [1, 1]} : vector<16x128xf32> to vector<1x128xf32>
    %18 = vector.broadcast %17 : vector<1x128xf32> to vector<32x128xf32>
    %19 = arith.addf %16, %18 : vector<32x128xf32>
    %cst_15 = arith.constant 0.000000e+00 : f32
    %20 = vector.broadcast %cst_15 : f32 to vector<32x128xf32>
    %21 = arith.maximumf %19, %20 : vector<32x128xf32>
    %22 = vector.extract_strided_slice %15 {offsets = [0, 128], sizes = [32, 128], strides = [1, 1]} : vector<32x256xf32> to vector<32x128xf32>
    %23 = vector.extract_strided_slice %3 {offsets = [1, 0], sizes = [1, 128], strides = [1, 1]} : vector<16x128xf32> to vector<1x128xf32>
    %24 = vector.broadcast %23 : vector<1x128xf32> to vector<32x128xf32>
    %25 = arith.addf %22, %24 : vector<32x128xf32>
    %cst_16 = arith.constant 0.000000e+00 : f32
    %26 = vector.broadcast %cst_16 : f32 to vector<32x128xf32>
    %27 = arith.maximumf %25, %26 : vector<32x128xf32>
    %28 = vector.extract_strided_slice %3 {offsets = [2, 0], sizes = [1, 128], strides = [1, 1]} : vector<16x128xf32> to vector<1x128xf32>
    %29 = vector.broadcast %28 : vector<1x128xf32> to vector<32x128xf32>
    %30 = arith.mulf %21, %29 : vector<32x128xf32>
    %31 = vector.extract_strided_slice %3 {offsets = [3, 0], sizes = [1, 128], strides = [1, 1]} : vector<16x128xf32> to vector<1x128xf32>
    %32 = vector.broadcast %31 : vector<1x128xf32> to vector<32x128xf32>
    %33 = arith.mulf %27, %32 : vector<32x128xf32>
    %34 = arith.addf %30, %33 : vector<32x128xf32>
    %35 = vector.extract_strided_slice %3 {offsets = [4, 0], sizes = [1, 128], strides = [1, 1]} : vector<16x128xf32> to vector<1x128xf32>
    %36 = vector.broadcast %35 : vector<1x128xf32> to vector<32x128xf32>
    %37 = arith.addf %34, %36 : vector<32x128xf32>
    %c0_17 = arith.constant 0 : index
    %c0_18 = arith.constant 0 : index
    %c0_19 = arith.constant 0 : index
    %38 = vector.load %arg5[%c0_17, %c0_18, %c0_19] : memref<1x128x128xf32, #tpu.memory_space<vmem>>, vector<1x128x128xf32>
    %39 = vector.shape_cast %38 : vector<1x128x128xf32> to vector<128x128xf32>
    %cst_20 = arith.constant dense<0.000000e+00> : vector<32x128xf32>
    %40 = tpu.matmul %37, %39, %cst_20 {dimension_numbers = #tpu.dot_dimension_numbers<[1], [0], [0], [1], [0, 0, 1, 1], [], []>} : vector<32x128xf32>, vector<128x128xf32>, vector<32x128xf32> -> vector<32x128xf32>
    %41 = vector.extract_strided_slice %3 {offsets = [5, 0], sizes = [1, 128], strides = [1, 1]} : vector<16x128xf32> to vector<1x128xf32>
    %42 = vector.broadcast %41 : vector<1x128xf32> to vector<32x128xf32>
    %43 = arith.addf %40, %42 : vector<32x128xf32>
    %cst_21 = arith.constant 0.000000e+00 : f32
    %44 = vector.broadcast %cst_21 : f32 to vector<32x128xf32>
    %45 = arith.maximumf %43, %44 : vector<32x128xf32>
    %46 = vector.extract_strided_slice %3 {offsets = [6, 0], sizes = [1, 128], strides = [1, 1]} : vector<16x128xf32> to vector<1x128xf32>
    %47 = vector.broadcast %46 : vector<1x128xf32> to vector<32x128xf32>
    %48 = arith.mulf %37, %47 : vector<32x128xf32>
    %49 = vector.extract_strided_slice %3 {offsets = [7, 0], sizes = [1, 128], strides = [1, 1]} : vector<16x128xf32> to vector<1x128xf32>
    %50 = vector.broadcast %49 : vector<1x128xf32> to vector<32x128xf32>
    %51 = arith.mulf %45, %50 : vector<32x128xf32>
    %52 = arith.addf %48, %51 : vector<32x128xf32>
    %53 = vector.extract_strided_slice %3 {offsets = [8, 0], sizes = [1, 128], strides = [1, 1]} : vector<16x128xf32> to vector<1x128xf32>
    %54 = vector.broadcast %53 : vector<1x128xf32> to vector<32x128xf32>
    %55 = arith.addf %52, %54 : vector<32x128xf32>
    %c0_22 = arith.constant 0 : index
    %c0_23 = arith.constant 0 : index
    %56 = vector.load %arg8[%c0_22, %c0_23] : memref<32x128xf32, #tpu.memory_space<vmem>>, vector<32x128xf32>
    tpu.vector_store %arg8[%c0_22, %c0_23], %55 {strides = array<i32>} : memref<32x128xf32, #tpu.memory_space<vmem>>, vector<32x128xf32>,
    return
  }
  func.func @transform_0(%arg0: i32, %arg1: memref<3xi32, #tpu.memory_space<smem>>) -> (i32, i32) {
    %c0_i32 = arith.constant 0 : i32
    %c0_i32_0 = arith.constant 0 : i32
    return %arg0, %c0_i32 : i32, i32
  }
  func.func @transform_1(%arg0: i32, %arg1: memref<3xi32, #tpu.memory_space<smem>>) -> (i32, i32, i32) {
    %0 = arith.index_cast %arg0 : i32 to index
    %1 = memref.load %arg1[%0] : memref<3xi32, #tpu.memory_space<smem>>
    %c0_i32 = arith.constant 0 : i32
    %c0_i32_0 = arith.constant 0 : i32
    %c0_i32_1 = arith.constant 0 : i32
    return %1, %c0_i32, %c0_i32_0 : i32, i32, i32
  }
  func.func @transform_2(%arg0: i32, %arg1: memref<3xi32, #tpu.memory_space<smem>>) -> (i32, i32, i32) {
    %0 = arith.index_cast %arg0 : i32 to index
    %1 = memref.load %arg1[%0] : memref<3xi32, #tpu.memory_space<smem>>
    %c0_i32 = arith.constant 0 : i32
    %c0_i32_0 = arith.constant 0 : i32
    %c0_i32_1 = arith.constant 0 : i32
    return %1, %c0_i32, %c0_i32_0 : i32, i32, i32
  }
  func.func @transform_3(%arg0: i32, %arg1: memref<3xi32, #tpu.memory_space<smem>>) -> (i32, i32, i32) {
    %0 = arith.index_cast %arg0 : i32 to index
    %1 = memref.load %arg1[%0] : memref<3xi32, #tpu.memory_space<smem>>
    %c0_i32 = arith.constant 0 : i32
    %c0_i32_0 = arith.constant 0 : i32
    %c0_i32_1 = arith.constant 0 : i32
    return %1, %c0_i32, %c0_i32_0 : i32, i32, i32
  }
  func.func @transform_4(%arg0: i32, %arg1: memref<3xi32, #tpu.memory_space<smem>>) -> (i32, i32, i32) {
    %0 = arith.index_cast %arg0 : i32 to index
    %1 = memref.load %arg1[%0] : memref<3xi32, #tpu.memory_space<smem>>
    %c0_i32 = arith.constant 0 : i32
    %c0_i32_0 = arith.constant 0 : i32
    %c0_i32_1 = arith.constant 0 : i32
    return %1, %c0_i32, %c0_i32_0 : i32, i32, i32
  }
  func.func @transform_5(%arg0: i32, %arg1: memref<3xi32, #tpu.memory_space<smem>>) -> (i32, i32, i32) {
    %0 = arith.index_cast %arg0 : i32 to index
    %1 = memref.load %arg1[%0] : memref<3xi32, #tpu.memory_space<smem>>
    %c0_i32 = arith.constant 0 : i32
    %c0_i32_0 = arith.constant 0 : i32
    %c0_i32_1 = arith.constant 0 : i32
    return %1, %c0_i32, %c0_i32_0 : i32, i32, i32
  }
  func.func @transform_6(%arg0: i32, %arg1: memref<3xi32, #tpu.memory_space<smem>>) -> (i32, i32) {
    %c0_i32 = arith.constant 0 : i32
    %c0_i32_0 = arith.constant 0 : i32
    return %arg0, %c0_i32 : i32, i32
  }
}

</mosaic_0001>

<llo_original>
// kernel: tpu_custom_call.1
$region0: #{tpu_custom_call.1}
  #allocation0 [shape = 'u32[]', space=smem, size = 0x4, offset = 0x4, fixed_abs, tag = 'smem constant byte address 0x4 - core index']
  #allocation1 [shape = 'u32[144,128]{1,0:T(1,128)}', space=vmem, size = 0x12000, scoped, tag = 'internal scratch']
  #allocation2 [shape = 's32[1]{0}', space=sflag, size = 0x4, scoped, tag = 'scoped memory for tpu_custom_call.1']
  #allocation3 [shape = 'u8[512]{0}', space=smem, size = 0x200, scoped, tag = 'prefetched SMEM operand 0']
  %s0 = inlined_call_operand.vmem [shape: s32[3], index: 0, kind: input, shape index: {}]
  %s1 = inlined_call_operand.vmem [shape: f32[96,16], index: 1, kind: input, shape index: {}]
  %s2 = inlined_call_operand.vmem [shape: f32[3,16,64], index: 2, kind: input, shape index: {}]
  %s3 = inlined_call_operand.hbm [shape: f32[3,64,256], index: 3, kind: input, shape index: {}]
  %s4 = inlined_call_operand.hbm [shape: f32[3,128,128], index: 4, kind: input, shape index: {}]
  %s5 = inlined_call_operand.vmem [shape: f32[3,8,64], index: 5, kind: input, shape index: {}]
  %s6 = inlined_call_operand.vmem [shape: f32[3,16,128], index: 6, kind: input, shape index: {}]
  %s7 = inlined_call_operand.hbm [shape: f32[96,128], index: 7, kind: output, shape index: {}]
  %s8 = sld [smem:[#allocation0]]
  $region65: #{tpu_custom_call.1} parent=0
    _
  %s10 = ssub.s32 1, %s8
  %s11 = scalar_select 0, %s10, %s8
  %s12 = sshll.u32 %s0, 4
  %s13 = int_to_ptr.vmem [resolvable:$true] %s12
  %15 = dma.vmem_to_smem %s13, 16, [#allocation3], [#allocation2]
  %16 = dma.done [#allocation2], 16
  %17 = sfence
  $region1: #{tpu_custom_call.1} parent=0
    #allocation4 [shape = 'u8[131072]{0}', space=vmem, size = 0x20000, scoped, tag = 'input window, operand 3']
    #allocation5 [shape = 's32[2]{0}', space=sflag, size = 0x8, scoped, tag = 'scoped memory for tpu_custom_call.1']
    #allocation6 [shape = 's32[2]{0}', space=sflag, size = 0x8, scoped, tag = 'scoped memory for tpu_custom_call.1']
    #allocation7 [shape = 'u8[131072]{0}', space=vmem, size = 0x20000, scoped, tag = 'input window, operand 4']
    #allocation8 [shape = 's32[2]{0}', space=sflag, size = 0x8, scoped, tag = 'scoped memory for tpu_custom_call.1']
    #allocation9 [shape = 'u8[32768]{0}', space=vmem, size = 0x8000, scoped, tag = 'output window, operand 0']
    %18 = vsyncpa [#allocation5], 0
    %s19 = scalar_lea.sflag [#allocation5], 1
    %20 = vsyncpa %s19, 0
    %21 = vsyncpa [#allocation8], 0
    %s22 = scalar_lea.sflag [#allocation8], 1
    %23 = vsyncpa %s22, 0
    %24 = vsyncpa [#allocation6], 0
    %s25 = scalar_lea.sflag [#allocation6], 1
    %26 = vsyncpa %s25, 0
    loop: start=0, step=1, limit=5
    $region2: #{tpu_custom_call.1} parent=1 // loop_pre_header
      _
    $region3: #{tpu_custom_call.1} parent=1 // loop_header
      %s28 = sphi 0, %s32
      %p29 = scmp.ge.s32.totalorder %s28, 5
      %s38 = sphi 0, %s40
      %s41 = sphi 0, %s38
      %s42 = sphi 0, %s41
      %s58 = sphi 0, %s42
      %s66 = sphi 0, %s68
      %s69 = sphi 0, %s66
      %s70 = sphi 0, %s69
      %s86 = sphi 0, %s70
      %s94 = sphi 0, %s96
      %s97 = sphi 0, %s94
      %s98 = sphi 0, %s97
      %s114 = sphi 0, %s98
      %s122 = sphi 0, %s124
      %s125 = sphi 0, %s122
      %s126 = sphi 0, %s125
      %s142 = sphi 0, %s126
      %s150 = sphi 0, %s152
      %s153 = sphi 0, %s150
      %s154 = sphi 0, %s153
      %s170 = sphi 0, %s154
      %s178 = sphi 0, %s180
      %s181 = sphi 0, %s178
      %s182 = sphi 0, %s181
      %s198 = sphi 0, %s182
      %s204 = sphi 0, %s206
      %s207 = sphi 0, %s204
      %s208 = sphi 0, %s207
      %s224 = sphi 0, %s208
    $region4: #{tpu_custom_call.1} parent=1 // loop_header_branch
      %31 = sbr.rel (%p29) target = $region8
    $region5: #{tpu_custom_call.1} parent=1 // loop_body
      %s33 = ssub.s32 %s28, 1
      %s34 = ssub.s32 %s28, 2
      %s35 = sadd.s32 %s28, 1
      %s36 = ssub.s32 %s28, %s35
      %p37 = scmp.eq.s32.totalorder %s36, 0
      %s39 = sadd.s32 %s38, 1
      %s40 = scalar_select %p37, %s38, %s39
      %p43 = pneg %p37
      %p44 = scmp.eq.s32.totalorder %s28, 2
      %p45 = por %p43, %p44
      %p46 = scmp.ne.s32.totalorder %s38, %s41
      %p47 = scmp.eq.s32.totalorder %s28, 0
      %p48 = por %p46, %p47
      %p49 = scmp.ne.s32.totalorder %s38, %s41
      %p50 = scmp.eq.s32.totalorder %s33, 2
      %p51 = por %p49, %p50
      %p52 = scmp.ne.s32.totalorder %s41, %s42
      %p53 = scmp.eq.s32.totalorder %s33, 0
      %p54 = por %p52, %p53
      %p55 = scmp.ne.s32.totalorder %s41, %s42
      %p56 = scmp.eq.s32.totalorder %s34, 2
      %p57 = por %p55, %p56
      %p59 = scmp.ne.s32.totalorder %s42, %s58
      %p60 = scmp.eq.s32.totalorder %s34, 0
      %p61 = por %p59, %p60
      %s62 = sld [smem:[#allocation3 + %s28]]
      %s63 = sld [smem:[#allocation3 + %s35]]
      %s64 = ssub.s32 %s62, %s63
      %p65 = scmp.eq.s32.totalorder %s64, 0
      %s67 = sadd.s32 %s66, 1
      %s68 = scalar_select %p65, %s66, %s67
      %p71 = pneg %p65
      %p72 = scmp.eq.s32.totalorder %s28, 2
      %p73 = por %p71, %p72
      %p74 = scmp.ne.s32.totalorder %s66, %s69
      %p75 = scmp.eq.s32.totalorder %s28, 0
      %p76 = por %p74, %p75
      %p77 = scmp.ne.s32.totalorder %s66, %s69
      %p78 = scmp.eq.s32.totalorder %s33, 2
      %p79 = por %p77, %p78
      %p80 = scmp.ne.s32.totalorder %s69, %s70
      %p81 = scmp.eq.s32.totalorder %s33, 0
      %p82 = por %p80, %p81
      %p83 = scmp.ne.s32.totalorder %s69, %s70
      %p84 = scmp.eq.s32.totalorder %s34, 2
      %p85 = por %p83, %p84
      %p87 = scmp.ne.s32.totalorder %s70, %s86
      %p88 = scmp.eq.s32.totalorder %s34, 0
      %p89 = por %p87, %p88
      %s90 = sld [smem:[#allocation3 + %s28]]
      %s91 = sld [smem:[#allocation3 + %s35]]
      %s92 = ssub.s32 %s90, %s91
      %p93 = scmp.eq.s32.totalorder %s92, 0
      %s95 = sadd.s32 %s94, 1
      %s96 = scalar_select %p93, %s94, %s95
      %p99 = pneg %p93
      %p100 = scmp.eq.s32.totalorder %s28, 2
      %p101 = por %p99, %p100
      %p102 = scmp.ne.s32.totalorder %s94, %s97
      %p103 = scmp.eq.s32.totalorder %s28, 0
      %p104 = por %p102, %p103
      %p105 = scmp.ne.s32.totalorder %s94, %s97
      %p106 = scmp.eq.s32.totalorder %s33, 2
      %p107 = por %p105, %p106
      %p108 = scmp.ne.s32.totalorder %s97, %s98
      %p109 = scmp.eq.s32.totalorder %s33, 0
      %p110 = por %p108, %p109
      %p111 = scmp.ne.s32.totalorder %s97, %s98
      %p112 = scmp.eq.s32.totalorder %s34, 2
      %p113 = por %p111, %p112
      %p115 = scmp.ne.s32.totalorder %s98, %s114
      %p116 = scmp.eq.s32.totalorder %s34, 0
      %p117 = por %p115, %p116
      %s118 = sld [smem:[#allocation3 + %s28]]
      %s119 = sld [smem:[#allocation3 + %s35]]
      %s120 = ssub.s32 %s118, %s119
      %p121 = scmp.eq.s32.totalorder %s120, 0
      %s123 = sadd.s32 %s122, 1
      %s124 = scalar_select %p121, %s122, %s123
      %p127 = pneg %p121
      %p128 = scmp.eq.s32.totalorder %s28, 2
      %p129 = por %p127, %p128
      %p130 = scmp.ne.s32.totalorder %s122, %s125
      %p131 = scmp.eq.s32.totalorder %s28, 0
      %p132 = por %p130, %p131
      %p133 = scmp.ne.s32.totalorder %s122, %s125
      %p134 = scmp.eq.s32.totalorder %s33, 2
      %p135 = por %p133, %p134
      %p136 = scmp.ne.s32.totalorder %s125, %s126
      %p137 = scmp.eq.s32.totalorder %s33, 0
      %p138 = por %p136, %p137
      %p139 = scmp.ne.s32.totalorder %s125, %s126
      %p140 = scmp.eq.s32.totalorder %s34, 2
      %p141 = por %p139, %p140
      %p143 = scmp.ne.s32.totalorder %s126, %s142
      %p144 = scmp.eq.s32.totalorder %s34, 0
      %p145 = por %p143, %p144
      %s146 = sld [smem:[#allocation3 + %s28]]
      %s147 = sld [smem:[#allocation3 + %s35]]
      %s148 = ssub.s32 %s146, %s147
      %p149 = scmp.eq.s32.totalorder %s148, 0
      %s151 = sadd.s32 %s150, 1
      %s152 = scalar_select %p149, %s150, %s151
      %p155 = pneg %p149
      %p156 = scmp.eq.s32.totalorder %s28, 2
      %p157 = por %p155, %p156
      %p158 = scmp.ne.s32.totalorder %s150, %s153
      %p159 = scmp.eq.s32.totalorder %s28, 0
      %p160 = por %p158, %p159
      %p161 = scmp.ne.s32.totalorder %s150, %s153
      %p162 = scmp.eq.s32.totalorder %s33, 2
      %p163 = por %p161, %p162
      %p164 = scmp.ne.s32.totalorder %s153, %s154
      %p165 = scmp.eq.s32.totalorder %s33, 0
      %p166 = por %p164, %p165
      %p167 = scmp.ne.s32.totalorder %s153, %s154
      %p168 = scmp.eq.s32.totalorder %s34, 2
      %p169 = por %p167, %p168
      %p171 = scmp.ne.s32.totalorder %s154, %s170
      %p172 = scmp.eq.s32.totalorder %s34, 0
      %p173 = por %p171, %p172
      %s174 = sld [smem:[#allocation3 + %s28]]
      %s175 = sld [smem:[#allocation3 + %s35]]
      %s176 = ssub.s32 %s174, %s175
      %p177 = scmp.eq.s32.totalorder %s176, 0
      %s179 = sadd.s32 %s178, 1
      %s180 = scalar_select %p177, %s178, %s179
      %p183 = pneg %p177
      %p184 = scmp.eq.s32.totalorder %s28, 2
      %p185 = por %p183, %p184
      %p186 = scmp.ne.s32.totalorder %s178, %s181
      %p187 = scmp.eq.s32.totalorder %s28, 0
      %p188 = por %p186, %p187
      %p189 = scmp.ne.s32.totalorder %s178, %s181
      %p190 = scmp.eq.s32.totalorder %s33, 2
      %p191 = por %p189, %p190
      %p192 = scmp.ne.s32.totalorder %s181, %s182
      %p193 = scmp.eq.s32.totalorder %s33, 0
      %p194 = por %p192, %p193
      %p195 = scmp.ne.s32.totalorder %s181, %s182
      %p196 = scmp.eq.s32.totalorder %s34, 2
      %p197 = por %p195, %p196
      %p199 = scmp.ne.s32.totalorder %s182, %s198
      %p200 = scmp.eq.s32.totalorder %s34, 0
      %p201 = por %p199, %p200
      %s202 = ssub.s32 %s28, %s35
      %p203 = scmp.eq.s32.totalorder %s202, 0
      %s205 = sadd.s32 %s204, 1
      %s206 = scalar_select %p203, %s204, %s205
      %p209 = pneg %p203
      %p210 = scmp.eq.s32.totalorder %s28, 2
      %p211 = por %p209, %p210
      %p212 = scmp.ne.s32.totalorder %s204, %s207
      %p213 = scmp.eq.s32.totalorder %s28, 0
      %p214 = por %p212, %p213
      %p215 = scmp.ne.s32.totalorder %s204, %s207
      %p216 = scmp.eq.s32.totalorder %s33, 2
      %p217 = por %p215, %p216
      %p218 = scmp.ne.s32.totalorder %s207, %s208
      %p219 = scmp.eq.s32.totalorder %s33, 0
      %p220 = por %p218, %p219
      %p221 = scmp.ne.s32.totalorder %s207, %s208
      %p222 = scmp.eq.s32.totalorder %s34, 2
      %p223 = por %p221, %p222
      %p225 = scmp.ne.s32.totalorder %s208, %s224
      %p226 = scmp.eq.s32.totalorder %s34, 0
      %p227 = por %p225, %p226
      %p228 = scmp.le.s32.totalorder 1, %s28
      %p229 = scmp.lt.s32.totalorder %s28, 4
      %p230 = pnand %p228, %p229
      %p231 = pneg %p230
      // Predicated region
      $region9: #{tpu_custom_call.1} parent=5 // pred_check
        _
      $region10: #{tpu_custom_call.1} parent=5 // pred_check_branch
        %233 = sbr.rel (%p230) target = $region12
      $region11: #{tpu_custom_call.1} parent=5 // pred_region
        %s234 = ssub.s32 %s28, 1
      $region12: #{tpu_custom_call.1} parent=5 // pred_fallthru
        _
      %p235 = scmp.lt.s32.totalorder %s28, 3
      // Predicated region
      $region13: #{tpu_custom_call.1} parent=5 // pred_check
        %p236 = pneg %p235
      $region14: #{tpu_custom_call.1} parent=5 // pred_check_branch
        %238 = sbr.rel (%p236) target = $region16
      $region15: #{tpu_custom_call.1} parent=5 // pred_region
        // Predicated region
        $region17: #{tpu_custom_call.1} parent=15 // pred_check
          %p239 = pneg %p48
        $region18: #{tpu_custom_call.1} parent=15 // pred_check_branch
          %241 = sbr.rel (%p239) target = $region20
        $region19: #{tpu_custom_call.1} parent=15 // pred_region
          %s242 = smul.u32 4, %s28
          %p243 = scmp.lt.s32.totalorder %s242, 11
          %s244 = scalar_select %p243, %s242, 11
          %s245 = smul.addr %s244, 8
          %s246 = scalar_lea.vmem %s1, %s245
          %s247 = smul.u32 4, %s28
        $region20: #{tpu_custom_call.1} parent=15 // pred_fallthru
          _
        // Predicated region
        $region21: #{tpu_custom_call.1} parent=15 // pred_check
          %p248 = pneg %p76
        $region22: #{tpu_custom_call.1} parent=15 // pred_check_branch
          %250 = sbr.rel (%p248) target = $region24
        $region23: #{tpu_custom_call.1} parent=15 // pred_region
          %s251 = sld [smem:[#allocation3 + %s28]]
          %p252 = scmp.lt.s32.totalorder %s251, 2
          %s253 = scalar_select %p252, %s251, 2
          %s254 = smul.addr %s253, 2
          %s255 = smul.addr %s254, 8
          %s256 = scalar_lea.vmem %s2, %s255
          %s257 = sld [smem:[#allocation3 + %s28]]
        $region24: #{tpu_custom_call.1} parent=15 // pred_fallthru
          _
        // Predicated region
        $region25: #{tpu_custom_call.1} parent=15 // pred_check
          %p258 = pneg %p104
        $region26: #{tpu_custom_call.1} parent=15 // pred_check_branch
          %260 = sbr.rel (%p258) target = $region28
        $region27: #{tpu_custom_call.1} parent=15 // pred_region
          %s261 = sand.u32 %s94, 1
          %s262 = scalar_lea.sflag [#allocation5], %s261
          %s263 = sand.u32 %s94, 1
          %s264 = smul.addr %s263, 128
          %s265 = scalar_lea.vmem [#allocation4], %s264
          %s266 = sld [smem:[#allocation3 + %s28]]
          %s268 = ssub.s32 2048, 2048
          %269 = vsyncadd %s262, %s268
          %s270 = smul.addr %s266, 16
          %s271 = smul.addr %s270, 128
          %s272 = scalar_lea.hbm %s3, %s271
          %s273 = sshll.u32 %s265, 4
          %s274 = int_to_ptr.vmem [resolvable:$true] %s273
          %279 = dma.hbm_to_vmem [thread:$0]  %s272, 2048, %s274, %s262, 256, 256, 16
        $region28: #{tpu_custom_call.1} parent=15 // pred_fallthru
          _
        // Predicated region
        $region29: #{tpu_custom_call.1} parent=15 // pred_check
          %p280 = pneg %p132
        $region30: #{tpu_custom_call.1} parent=15 // pred_check_branch
          %282 = sbr.rel (%p280) target = $region32
        $region31: #{tpu_custom_call.1} parent=15 // pred_region
          %s283 = sand.u32 %s122, 1
          %s284 = scalar_lea.sflag [#allocation8], %s283
          %s285 = sand.u32 %s122, 1
          %s286 = smul.addr %s285, 128
          %s287 = scalar_lea.vmem [#allocation7], %s286
          %s288 = sld [smem:[#allocation3 + %s28]]
          %s290 = ssub.s32 2048, 2048
          %291 = vsyncadd %s284, %s290
          %s292 = smul.addr %s288, 16
          %s293 = smul.addr %s292, 128
          %s294 = scalar_lea.hbm %s4, %s293
          %s295 = sshll.u32 %s287, 4
          %s296 = int_to_ptr.vmem [resolvable:$true] %s295
          %301 = dma.hbm_to_vmem [thread:$0]  %s294, 2048, %s296, %s284, 128, 128, 8
        $region32: #{tpu_custom_call.1} parent=15 // pred_fallthru
          _
        // Predicated region
        $region33: #{tpu_custom_call.1} parent=15 // pred_check
          %p302 = pneg %p160
        $region34: #{tpu_custom_call.1} parent=15 // pred_check_branch
          %304 = sbr.rel (%p302) target = $region36
        $region35: #{tpu_custom_call.1} parent=15 // pred_region
          %s305 = sld [smem:[#allocation3 + %s28]]
          %p306 = scmp.lt.s32.totalorder %s305, 2
          %s307 = scalar_select %p306, %s305, 2
          %s308 = smul.addr %s307, 8
          %s309 = scalar_lea.vmem %s5, %s308
          %s310 = sld [smem:[#allocation3 + %s28]]
        $region36: #{tpu_custom_call.1} parent=15 // pred_fallthru
          _
        // Predicated region
        $region37: #{tpu_custom_call.1} parent=15 // pred_check
          %p311 = pneg %p188
        $region38: #{tpu_custom_call.1} parent=15 // pred_check_branch
          %313 = sbr.rel (%p311) target = $region40
        $region39: #{tpu_custom_call.1} parent=15 // pred_region
          %s314 = sld [smem:[#allocation3 + %s28]]
          %p315 = scmp.lt.s32.totalorder %s314, 2
          %s316 = scalar_select %p315, %s314, 2
          %s317 = smul.addr %s316, 2
          %s318 = smul.addr %s317, 8
          %s319 = scalar_lea.vmem %s6, %s318
          %s320 = sld [smem:[#allocation3 + %s28]]
        $region40: #{tpu_custom_call.1} parent=15 // pred_fallthru
          _
      $region16: #{tpu_custom_call.1} parent=5 // pred_fallthru
        _
      %p321 = scmp.le.s32.totalorder 1, %s28
      %p322 = scmp.lt.s32.totalorder %s28, 4
      %p323 = pnand %p321, %p322
      %p324 = pneg %p323
      // Predicated region
      $region41: #{tpu_custom_call.1} parent=5 // pred_check
        _
      $region42: #{tpu_custom_call.1} parent=5 // pred_check_branch
        %326 = sbr.rel (%p323) target = $region44
      $region43: #{tpu_custom_call.1} parent=5 // pred_region
        %s327 = ssub.s32 %s28, 1
        %s328 = sand.u32 %s97, 1
        %s329 = scalar_lea.sflag [#allocation5], %s328
        %s330 = sand.u32 %s97, 1
        %s331 = smul.addr %s330, 128
        %s332 = scalar_lea.vmem [#allocation4], %s331
        // Predicated region
        $region45: #{tpu_custom_call.1} parent=43 // pred_check
          %p333 = pneg %p110
        $region46: #{tpu_custom_call.1} parent=43 // pred_check_branch
          %335 = sbr.rel (%p333) target = $region48
        $region47: #{tpu_custom_call.1} parent=43 // pred_region
          %336 = dma.done %s329, 2048
        $region48: #{tpu_custom_call.1} parent=43 // pred_fallthru
          _
        %s337 = sand.u32 %s125, 1
        %s338 = scalar_lea.sflag [#allocation8], %s337
        %s339 = sand.u32 %s125, 1
        %s340 = smul.addr %s339, 128
        %s341 = scalar_lea.vmem [#allocation7], %s340
        // Predicated region
        $region49: #{tpu_custom_call.1} parent=43 // pred_check
          %p342 = pneg %p138
        $region50: #{tpu_custom_call.1} parent=43 // pred_check_branch
          %344 = sbr.rel (%p342) target = $region52
        $region51: #{tpu_custom_call.1} parent=43 // pred_region
          %345 = dma.done %s338, 2048
        $region52: #{tpu_custom_call.1} parent=43 // pred_fallthru
          _
        %s346 = smul.u32 4, %s33
        %p347 = scmp.lt.s32.totalorder %s346, 11
        %s348 = scalar_select %p347, %s346, 11
        %s349 = smul.addr %s348, 8
        %s350 = scalar_lea.vmem %s1, %s349
        %p351 = pneg %p54
        %p352 = pneg %p51
        %s353 = sld [smem:[#allocation3 + %s33]]
        %p354 = scmp.lt.s32.totalorder %s353, 2
        %s355 = scalar_select %p354, %s353, 2
        %s356 = smul.addr %s355, 2
        %s357 = smul.addr %s356, 8
        %s358 = scalar_lea.vmem %s2, %s357
        %p359 = pneg %p82
        %p360 = pneg %p79
        %s361 = sand.u32 %s97, 1
        %s362 = scalar_lea.sflag [#allocation5], %s361
        %s363 = sand.u32 %s97, 1
        %s364 = smul.addr %s363, 128
        %s365 = scalar_lea.vmem [#allocation4], %s364
        %p366 = pneg %p110
        %p367 = pneg %p107
        %s368 = sand.u32 %s125, 1
        %s369 = scalar_lea.sflag [#allocation8], %s368
        %s370 = sand.u32 %s125, 1
        %s371 = smul.addr %s370, 128
        %s372 = scalar_lea.vmem [#allocation7], %s371
        %p373 = pneg %p138
        %p374 = pneg %p135
        %s375 = sld [smem:[#allocation3 + %s33]]
        %p376 = scmp.lt.s32.totalorder %s375, 2
        %s377 = scalar_select %p376, %s375, 2
        %s378 = smul.addr %s377, 8
        %s379 = scalar_lea.vmem %s5, %s378
        %p380 = pneg %p166
        %p381 = pneg %p163
        %s382 = sld [smem:[#allocation3 + %s33]]
        %p383 = scmp.lt.s32.totalorder %s382, 2
        %s384 = scalar_select %p383, %s382, 2
        %s385 = smul.addr %s384, 2
        %s386 = smul.addr %s385, 8
        %s387 = scalar_lea.vmem %s6, %s386
        %p388 = pneg %p194
        %p389 = pneg %p191
        %p390 = pneg %p220
        %p391 = pneg %p217
        %s392 = sand.u32 %s207, 1
        %s393 = scalar_lea.sflag [#allocation6], %s392
        %s394 = sand.u32 %s207, 1
        %s395 = smul.addr %s394, 32
        %s396 = scalar_lea.vmem [#allocation9], %s395
        %s397 = smul.u32 4, %s33
        %p398 = scmp.lt.s32.totalorder %s397, 11
        %s399 = scalar_select %p398, %s397, 11
        %s400 = smul.addr %s399, 8
        %s401 = scalar_lea.vmem %s1, %s400
        %s402 = smul.u32 4, %s33
        %s403 = sld [smem:[#allocation3 + %s33]]
        %p404 = scmp.lt.s32.totalorder %s403, 2
        %s405 = scalar_select %p404, %s403, 2
        %s406 = smul.addr %s405, 2
        %s407 = smul.addr %s406, 8
        %s408 = scalar_lea.vmem %s2, %s407
        %s409 = sld [smem:[#allocation3 + %s33]]
        %s410 = sld [smem:[#allocation3 + %s33]]
        %s411 = sld [smem:[#allocation3 + %s33]]
        %s412 = sld [smem:[#allocation3 + %s33]]
        %p413 = scmp.lt.s32.totalorder %s412, 2
        %s414 = scalar_select %p413, %s412, 2
        %s415 = smul.addr %s414, 8
        %s416 = scalar_lea.vmem %s5, %s415
        %s417 = sld [smem:[#allocation3 + %s33]]
        %s418 = sld [smem:[#allocation3 + %s33]]
        %p419 = scmp.lt.s32.totalorder %s418, 2
        %s420 = scalar_select %p419, %s418, 2
        %s421 = smul.addr %s420, 2
        %s422 = smul.addr %s421, 8
        %s423 = scalar_lea.vmem %s6, %s422
        %s424 = sld [smem:[#allocation3 + %s33]]
        %s425 = smul.u32 4, %s33
        %v426 = vld [vmem:[%s416] sm:$0xff]
        %v427 = vld [vmem:[%s423] sm:$0xff]
        %v428 = vld [vmem:[%s423 + $0x8] sm:$0xff]
        %v429 = vld [vmem:[%s401] sm:$0xff]
        %v430 = vld [vmem:[%s401 + $0x8] sm:$0xff]
        %v431 = vld [vmem:[%s401 + $0x10] sm:$0xff]
        %v432 = vld [vmem:[%s401 + $0x18] sm:$0xff]
        %v433 = vld [vmem:[%s408] sm:$0xff]
        %v434 = vld [vmem:[%s408 + $0x8] sm:$0xff]
        %v435 = vlaneseq
        %v436 = vshrl.u32 %v435, 7
        %v437 = vsub.s32 0, %v436
        %v438 = vrot.slane %v426, %v437
        %vm439 = vcmask 130048
        %v441 = vsel %vm439, %v429, 0
        %v444 = vsel %vm439, %v430, 0
        %v447 = vsel %vm439, %v431, 0
        %v450 = vsel %vm439, %v432, 0
        %452 = vmatprep.subr.mxu0 0.0
        %453 = vmatpush1.msra.mxu0 %v433
        %454 = vmatprep.subr.mxu0 0.0
        %455 = vmatpush1.msra.mxu0 %v434
        %456 = vmatprep.subr.mxu0 0.0
        %457 = vmatpush1.msra.mxu0 0.0
        %458 = vmatprep.subr.mxu0 0.0
        %459 = vmatpush1.msra.mxu0 0.0
        %460 = vmatprep.subr.mxu0 0.0
        %461 = vmatpush1.msra.mxu0 0.0
        %462 = vmatprep.subr.mxu0 0.0
        %463 = vmatpush1.msra.mxu0 0.0
        %464 = vmatprep.subr.mxu0 0.0
        %465 = vmatpush1.msra.mxu0 0.0
        %466 = vmatprep.subr.mxu0 0.0
        %467 = vmatpush1.msra.mxu0 0.0
        %468 = vmatprep.subr.mxu0 0.0
        %469 = vmatpush1.msra.mxu0 0.0
        %470 = vmatprep.subr.mxu0 0.0
        %471 = vmatpush1.msra.mxu0 0.0
        %472 = vmatprep.subr.mxu0 0.0
        %473 = vmatpush1.msra.mxu0 0.0
        %474 = vmatprep.subr.mxu0 0.0
        %475 = vmatpush1.msra.mxu0 0.0
        %476 = vmatprep.subr.mxu0 0.0
        %477 = vmatpush1.msra.mxu0 0.0
        %478 = vmatprep.subr.mxu0 0.0
        %479 = vmatpush1.msra.mxu0 0.0
        %480 = vmatprep.subr.mxu0 0.0
        %481 = vmatpush1.msra.mxu0 0.0
        %482 = vmatprep.subr.mxu0 0.0
        %483 = vmatpush1.msra.mxu0 0.0
        %484 = vmatprep.subr.mxu0 0.0
        %485 = vmatpush1.msra.mxu0 0.0
        %486 = vmatprep.subr.mxu0 0.0
        %487 = vmatpush1.msra.mxu0 0.0
        %488 = vmatprep.subr.mxu0 0.0
        %489 = vmatpush1.msra.mxu0 0.0
        %490 = vmatprep.subr.mxu0 0.0
        %491 = vmatpush1.msra.mxu0 0.0
        %492 = vmatprep.subr.mxu0 0.0
        %493 = vmatpush1.msra.mxu0 0.0
        %494 = vmatprep.subr.mxu0 0.0
        %495 = vmatpush1.msra.mxu0 0.0
        %496 = vmatprep.subr.mxu0 0.0
        %497 = vmatpush1.msra.mxu0 0.0
        %498 = vmatprep.subr.mxu0 0.0
        %499 = vmatpush1.msra.mxu0 0.0
        %500 = vmatprep.subr.mxu0 0.0
        %501 = vmatpush1.msra.mxu0 0.0
        %502 = vmatprep.subr.mxu0 0.0
        %503 = vmatpush1.msra.mxu0 0.0
        %504 = vmatprep.subr.mxu0 0.0
        %505 = vmatpush1.msra.mxu0 0.0
        %506 = vmatprep.subr.mxu0 0.0
        %507 = vmatpush1.msra.mxu0 0.0
        %508 = vmatprep.subr.mxu0 0.0
        %509 = vmatpush1.msra.mxu0 0.0
        %510 = vmatprep.subr.mxu0 0.0
        %511 = vmatpush1.msra.mxu0 0.0
        %512 = vmatprep.subr.mxu0 0.0
        %513 = vmatpush1.msra.mxu0 0.0
        %514 = vmatprep.subr.mxu0 0.0
        %515 = vmatpush1.msra.mxu0 0.0
        %516 = vmatprep.mubr.f32.mxu0 0.0
        %517 = vmatmul.mubr.f32.gmra.mrb[0].mxu0 %v441
        %v518 = vpop.f32.mrb[0].mxu0
        %v519 = vadd.f32 %v438, %v518
        %v520 = vpop.f32.mrb[0].mxu0
        %521 = vmatprep.mubr.f32.mxu0 0.0
        %522 = vmatmul.mubr.f32.gmra.mrb[0].mxu0 %v444
        %v523 = vpop.f32.mrb[0].mxu0
        %v524 = vadd.f32 %v438, %v523
        %v525 = vpop.f32.mrb[0].mxu0
        %526 = vmatprep.mubr.f32.mxu0 0.0
        %527 = vmatmul.mubr.f32.gmra.mrb[0].mxu0 %v447
        %v528 = vpop.f32.mrb[0].mxu0
        %v529 = vadd.f32 %v438, %v528
        %v530 = vpop.f32.mrb[0].mxu0
        %531 = vmatprep.mubr.f32.mxu0 0.0
        %532 = vmatmul.mubr.f32.gmra.mrb[0].mxu0 %v450
        %v533 = vpop.f32.mrb[0].mxu0
        %v534 = vadd.f32 %v438, %v533
        %v535 = vpop.f32.mrb[0].mxu0
        %536 = vdwg.mxu0
        %v537 = vmax.f32 %v519, 0.0
        %v538 = vmax.f32 %v524, 0.0
        %v539 = vmax.f32 %v529, 0.0
        %v540 = vmax.f32 %v534, 0.0
        %v541 = vld [vmem:[%s332] sm:$0xff]
        %v542 = vld [vmem:[%s332 + $0x8] sm:$0xff]
        %v543 = vld [vmem:[%s332 + $0x10] sm:$0xff]
        %v544 = vld [vmem:[%s332 + $0x18] sm:$0xff]
        %v545 = vld [vmem:[%s332 + $0x20] sm:$0xff]
        %v546 = vld [vmem:[%s332 + $0x28] sm:$0xff]
        %v547 = vld [vmem:[%s332 + $0x30] sm:$0xff]
        %v548 = vld [vmem:[%s332 + $0x38] sm:$0xff]
        %v549 = vld [vmem:[%s332 + $0x40] sm:$0xff]
        %v550 = vld [vmem:[%s332 + $0x48] sm:$0xff]
        %v551 = vld [vmem:[%s332 + $0x50] sm:$0xff]
        %v552 = vld [vmem:[%s332 + $0x58] sm:$0xff]
        %v553 = vld [vmem:[%s332 + $0x60] sm:$0xff]
        %v554 = vld [vmem:[%s332 + $0x68] sm:$0xff]
        %v555 = vld [vmem:[%s332 + $0x70] sm:$0xff]
        %v556 = vld [vmem:[%s332 + $0x78] sm:$0xff]
        %vm557 = vcmask 523264
        %v559 = vsel %vm557, %v537, 0
        %v562 = vsel %vm557, %v538, 0
        %v565 = vsel %vm557, %v539, 0
        %v568 = vsel %vm557, %v540, 0
        %570 = vmatprep.subr.mxu0 %v542
        %571 = vmatpush1.msra.mxu0 %v541
        %572 = vmatprep.subr.mxu0 %v544
        %573 = vmatpush1.msra.mxu0 %v543
        %574 = vmatprep.subr.mxu0 %v546
        %575 = vmatpush1.msra.mxu0 %v545
        %576 = vmatprep.subr.mxu0 %v548
        %577 = vmatpush1.msra.mxu0 %v547
        %578 = vmatprep.subr.mxu0 %v550
        %579 = vmatpush1.msra.mxu0 %v549
        %580 = vmatprep.subr.mxu0 %v552
        %581 = vmatpush1.msra.mxu0 %v551
        %582 = vmatprep.subr.mxu0 %v554
        %583 = vmatpush1.msra.mxu0 %v553
        %584 = vmatprep.subr.mxu0 %v556
        %585 = vmatpush1.msra.mxu0 %v555
        %586 = vmatprep.subr.mxu0 0.0
        %587 = vmatpush1.msra.mxu0 0.0
        %588 = vmatprep.subr.mxu0 0.0
        %589 = vmatpush1.msra.mxu0 0.0
        %590 = vmatprep.subr.mxu0 0.0
        %591 = vmatpush1.msra.mxu0 0.0
        %592 = vmatprep.subr.mxu0 0.0
        %593 = vmatpush1.msra.mxu0 0.0
        %594 = vmatprep.subr.mxu0 0.0
        %595 = vmatpush1.msra.mxu0 0.0
        %596 = vmatprep.subr.mxu0 0.0
        %597 = vmatpush1.msra.mxu0 0.0
        %598 = vmatprep.subr.mxu0 0.0
        %599 = vmatpush1.msra.mxu0 0.0
        %600 = vmatprep.subr.mxu0 0.0
        %601 = vmatpush1.msra.mxu0 0.0
        %602 = vmatprep.subr.mxu0 0.0
        %603 = vmatpush1.msra.mxu0 0.0
        %604 = vmatprep.subr.mxu0 0.0
        %605 = vmatpush1.msra.mxu0 0.0
        %606 = vmatprep.subr.mxu0 0.0
        %607 = vmatpush1.msra.mxu0 0.0
        %608 = vmatprep.subr.mxu0 0.0
        %609 = vmatpush1.msra.mxu0 0.0
        %610 = vmatprep.subr.mxu0 0.0
        %611 = vmatpush1.msra.mxu0 0.0
        %612 = vmatprep.subr.mxu0 0.0
        %613 = vmatpush1.msra.mxu0 0.0
        %614 = vmatprep.subr.mxu0 0.0
        %615 = vmatpush1.msra.mxu0 0.0
        %616 = vmatprep.subr.mxu0 0.0
        %617 = vmatpush1.msra.mxu0 0.0
        %618 = vmatprep.subr.mxu0 0.0
        %619 = vmatpush1.msra.mxu0 0.0
        %620 = vmatprep.subr.mxu0 0.0
        %621 = vmatpush1.msra.mxu0 0.0
        %622 = vmatprep.subr.mxu0 0.0
        %623 = vmatpush1.msra.mxu0 0.0
        %624 = vmatprep.subr.mxu0 0.0
        %625 = vmatpush1.msra.mxu0 0.0
        %626 = vmatprep.subr.mxu0 0.0
        %627 = vmatpush1.msra.mxu0 0.0
        %628 = vmatprep.subr.mxu0 0.0
        %629 = vmatpush1.msra.mxu0 0.0
        %630 = vmatprep.subr.mxu0 0.0
        %631 = vmatpush1.msra.mxu0 0.0
        %632 = vmatprep.subr.mxu0 0.0
        %633 = vmatpush1.msra.mxu0 0.0
        %634 = vmatprep.mubr.f32.mxu0 0.0
        %635 = vmatmul.mubr.f32.gmra.mrb[0].mxu0 %v559
        %v636 = vpop.f32.mrb[0].mxu0
        %v637 = vadd.f32 0.0, %v636
        %v638 = vpop.f32.mrb[0].mxu0
        %v639 = vadd.f32 0.0, %v638
        %640 = vmatprep.mubr.f32.mxu0 0.0
        %641 = vmatmul.mubr.f32.gmra.mrb[0].mxu0 %v562
        %v642 = vpop.f32.mrb[0].mxu0
        %v643 = vadd.f32 0.0, %v642
        %v644 = vpop.f32.mrb[0].mxu0
        %v645 = vadd.f32 0.0, %v644
        %646 = vmatprep.mubr.f32.mxu0 0.0
        %647 = vmatmul.mubr.f32.gmra.mrb[0].mxu0 %v565
        %v648 = vpop.f32.mrb[0].mxu0
        %v649 = vadd.f32 0.0, %v648
        %v650 = vpop.f32.mrb[0].mxu0
        %v651 = vadd.f32 0.0, %v650
        %652 = vmatprep.mubr.f32.mxu0 0.0
        %653 = vmatmul.mubr.f32.gmra.mrb[0].mxu0 %v568
        %v654 = vpop.f32.mrb[0].mxu0
        %v655 = vadd.f32 0.0, %v654
        %v656 = vpop.f32.mrb[0].mxu0
        %v657 = vadd.f32 0.0, %v656
        %658 = vdwg.mxu0
        %v659 = vlaneseq
        %v660 = vshrl.u32 %v659, 7
        %v661 = vsub.s32 0, %v660
        %v662 = vrot.slane %v427, %v661
        %v663 = vadd.f32 %v637, %v662
        %v664 = vadd.f32 %v643, %v662
        %v665 = vadd.f32 %v649, %v662
        %v666 = vadd.f32 %v655, %v662
        %v667 = vmax.f32 %v663, 0.0
        %v668 = vmax.f32 %v664, 0.0
        %v669 = vmax.f32 %v665, 0.0
        %v670 = vmax.f32 %v666, 0.0
        %v671 = vlaneseq
        %v672 = vshrl.u32 %v671, 7
        %v673 = vsub.s32 1, %v672
        %v674 = vrot.slane %v427, %v673
        %v675 = vadd.f32 %v639, %v674
        %v676 = vadd.f32 %v645, %v674
        %v677 = vadd.f32 %v651, %v674
        %v678 = vadd.f32 %v657, %v674
        %v679 = vmax.f32 %v675, 0.0
        %v680 = vmax.f32 %v676, 0.0
        %v681 = vmax.f32 %v677, 0.0
        %v682 = vmax.f32 %v678, 0.0
        %v683 = vlaneseq
        %v684 = vshrl.u32 %v683, 7
        %v685 = vsub.s32 2, %v684
        %v686 = vrot.slane %v427, %v685
        %v687 = vmul.f32 %v667, %v686
        %v688 = vmul.f32 %v668, %v686
        %v689 = vmul.f32 %v669, %v686
        %v690 = vmul.f32 %v670, %v686
        %v691 = vlaneseq
        %v692 = vshrl.u32 %v691, 7
        %v693 = vsub.s32 3, %v692
        %v694 = vrot.slane %v427, %v693
        %v695 = vmul.f32 %v679, %v694
        %v696 = vmul.f32 %v680, %v694
        %v697 = vmul.f32 %v681, %v694
        %v698 = vmul.f32 %v682, %v694
        %v699 = vadd.f32 %v687, %v695
        %v700 = vadd.f32 %v688, %v696
        %v701 = vadd.f32 %v689, %v697
        %v702 = vadd.f32 %v690, %v698
        %v703 = vlaneseq
        %v704 = vshrl.u32 %v703, 7
        %v705 = vsub.s32 4, %v704
        %v706 = vrot.slane %v427, %v705
        %v707 = vadd.f32 %v699, %v706
        %v708 = vadd.f32 %v700, %v706
        %v709 = vadd.f32 %v701, %v706
        %v710 = vadd.f32 %v702, %v706
        %v711 = vld [vmem:[%s341] sm:$0xff]
        %v712 = vld [vmem:[%s341 + $0x8] sm:$0xff]
        %v713 = vld [vmem:[%s341 + $0x10] sm:$0xff]
        %v714 = vld [vmem:[%s341 + $0x18] sm:$0xff]
        %v715 = vld [vmem:[%s341 + $0x20] sm:$0xff]
        %v716 = vld [vmem:[%s341 + $0x28] sm:$0xff]
        %v717 = vld [vmem:[%s341 + $0x30] sm:$0xff]
        %v718 = vld [vmem:[%s341 + $0x38] sm:$0xff]
        %v719 = vld [vmem:[%s341 + $0x40] sm:$0xff]
        %v720 = vld [vmem:[%s341 + $0x48] sm:$0xff]
        %v721 = vld [vmem:[%s341 + $0x50] sm:$0xff]
        %v722 = vld [vmem:[%s341 + $0x58] sm:$0xff]
        %v723 = vld [vmem:[%s341 + $0x60] sm:$0xff]
        %v724 = vld [vmem:[%s341 + $0x68] sm:$0xff]
        %v725 = vld [vmem:[%s341 + $0x70] sm:$0xff]
        %v726 = vld [vmem:[%s341 + $0x78] sm:$0xff]
        %v727 = vlaneseq
        %v728 = vshrl.u32 %v727, 7
        %v729 = vsub.s32 5, %v728
        %v730 = vrot.slane %v427, %v729
        %731 = vmatprep.subr.mxu0 0.0
        %732 = vmatpush1.msra.mxu0 %v711
        %733 = vmatprep.subr.mxu0 0.0
        %734 = vmatpush1.msra.mxu0 %v712
        %735 = vmatprep.subr.mxu0 0.0
        %736 = vmatpush1.msra.mxu0 %v713
        %737 = vmatprep.subr.mxu0 0.0
        %738 = vmatpush1.msra.mxu0 %v714
        %739 = vmatprep.subr.mxu0 0.0
        %740 = vmatpush1.msra.mxu0 %v715
        %741 = vmatprep.subr.mxu0 0.0
        %742 = vmatpush1.msra.mxu0 %v716
        %743 = vmatprep.subr.mxu0 0.0
        %744 = vmatpush1.msra.mxu0 %v717
        %745 = vmatprep.subr.mxu0 0.0
        %746 = vmatpush1.msra.mxu0 %v718
        %747 = vmatprep.subr.mxu0 0.0
        %748 = vmatpush1.msra.mxu0 %v719
        %749 = vmatprep.subr.mxu0 0.0
        %750 = vmatpush1.msra.mxu0 %v720
        %751 = vmatprep.subr.mxu0 0.0
        %752 = vmatpush1.msra.mxu0 %v721
        %753 = vmatprep.subr.mxu0 0.0
        %754 = vmatpush1.msra.mxu0 %v722
        %755 = vmatprep.subr.mxu0 0.0
        %756 = vmatpush1.msra.mxu0 %v723
        %757 = vmatprep.subr.mxu0 0.0
        %758 = vmatpush1.msra.mxu0 %v724
        %759 = vmatprep.subr.mxu0 0.0
        %760 = vmatpush1.msra.mxu0 %v725
        %761 = vmatprep.subr.mxu0 0.0
        %762 = vmatpush1.msra.mxu0 %v726
        %763 = vmatprep.subr.mxu0 0.0
        %764 = vmatpush1.msra.mxu0 0.0
        %765 = vmatprep.subr.mxu0 0.0
        %766 = vmatpush1.msra.mxu0 0.0
        %767 = vmatprep.subr.mxu0 0.0
        %768 = vmatpush1.msra.mxu0 0.0
        %769 = vmatprep.subr.mxu0 0.0
        %770 = vmatpush1.msra.mxu0 0.0
        %771 = vmatprep.subr.mxu0 0.0
        %772 = vmatpush1.msra.mxu0 0.0
        %773 = vmatprep.subr.mxu0 0.0
        %774 = vmatpush1.msra.mxu0 0.0
        %775 = vmatprep.subr.mxu0 0.0
        %776 = vmatpush1.msra.mxu0 0.0
        %777 = vmatprep.subr.mxu0 0.0
        %778 = vmatpush1.msra.mxu0 0.0
        %779 = vmatprep.subr.mxu0 0.0
        %780 = vmatpush1.msra.mxu0 0.0
        %781 = vmatprep.subr.mxu0 0.0
        %782 = vmatpush1.msra.mxu0 0.0
        %783 = vmatprep.subr.mxu0 0.0
        %784 = vmatpush1.msra.mxu0 0.0
        %785 = vmatprep.subr.mxu0 0.0
        %786 = vmatpush1.msra.mxu0 0.0
        %787 = vmatprep.subr.mxu0 0.0
        %788 = vmatpush1.msra.mxu0 0.0
        %789 = vmatprep.subr.mxu0 0.0
        %790 = vmatpush1.msra.mxu0 0.0
        %791 = vmatprep.subr.mxu0 0.0
        %792 = vmatpush1.msra.mxu0 0.0
        %793 = vmatprep.subr.mxu0 0.0
        %794 = vmatpush1.msra.mxu0 0.0
        %795 = vmatprep.mubr.f32.mxu0 0.0
        %796 = vmatmul.mubr.f32.gmra.mrb[0].mxu0 %v707
        %v797 = vpop.f32.mrb[0].mxu0
        %v798 = vadd.f32 %v730, %v797
        %v799 = vpop.f32.mrb[0].mxu0
        %800 = vmatprep.mubr.f32.mxu0 0.0
        %801 = vmatmul.mubr.f32.gmra.mrb[0].mxu0 %v708
        %v802 = vpop.f32.mrb[0].mxu0
        %v803 = vadd.f32 %v730, %v802
        %v804 = vpop.f32.mrb[0].mxu0
        %805 = vmatprep.mubr.f32.mxu0 0.0
        %806 = vmatmul.mubr.f32.gmra.mrb[0].mxu0 %v709
        %v807 = vpop.f32.mrb[0].mxu0
        %v808 = vadd.f32 %v730, %v807
        %v809 = vpop.f32.mrb[0].mxu0
        %810 = vmatprep.mubr.f32.mxu0 0.0
        %811 = vmatmul.mubr.f32.gmra.mrb[0].mxu0 %v710
        %v812 = vpop.f32.mrb[0].mxu0
        %v813 = vadd.f32 %v730, %v812
        %v814 = vpop.f32.mrb[0].mxu0
        %815 = vdwg.mxu0
        %v816 = vmax.f32 %v798, 0.0
        %v817 = vmax.f32 %v803, 0.0
        %v818 = vmax.f32 %v808, 0.0
        %v819 = vmax.f32 %v813, 0.0
        %v820 = vlaneseq
        %v821 = vshrl.u32 %v820, 7
        %v822 = vsub.s32 6, %v821
        %v823 = vrot.slane %v427, %v822
        %v824 = vmul.f32 %v707, %v823
        %v825 = vmul.f32 %v708, %v823
        %v826 = vmul.f32 %v709, %v823
        %v827 = vmul.f32 %v710, %v823
        %v828 = vlaneseq
        %v829 = vshrl.u32 %v828, 7
        %v830 = vsub.s32 7, %v829
        %v831 = vrot.slane %v427, %v830
        %v832 = vmul.f32 %v816, %v831
        %v833 = vmul.f32 %v817, %v831
        %v834 = vmul.f32 %v818, %v831
        %v835 = vmul.f32 %v819, %v831
        %v836 = vadd.f32 %v824, %v832
        %v837 = vadd.f32 %v825, %v833
        %v838 = vadd.f32 %v826, %v834
        %v839 = vadd.f32 %v827, %v835
        %v840 = vlaneseq
        %v841 = vshrl.u32 %v840, 7
        %v842 = vsub.s32 0, %v841
        %v843 = vrot.slane %v428, %v842
        %v844 = vadd.f32 %v836, %v843
        %v845 = vadd.f32 %v837, %v843
        %v846 = vadd.f32 %v838, %v843
        %v847 = vadd.f32 %v839, %v843
        %848 = vst [vmem:[%s396] sm:$0xff] %v844
        %849 = vst [vmem:[%s396 + $0x8] sm:$0xff] %v845
        %850 = vst [vmem:[%s396 + $0x10] sm:$0xff] %v846
        %851 = vst [vmem:[%s396 + $0x18] sm:$0xff] %v847
        %s852 = sand.u32 %s207, 1
        %s853 = scalar_lea.sflag [#allocation6], %s852
        %s854 = sand.u32 %s207, 1
        %s855 = smul.addr %s854, 32
        %s856 = scalar_lea.vmem [#allocation9], %s855
        // Predicated region
        $region53: #{tpu_custom_call.1} parent=43 // pred_check
          %p857 = pneg %p217
        $region54: #{tpu_custom_call.1} parent=43 // pred_check_branch
          %859 = sbr.rel (%p857) target = $region56
        $region55: #{tpu_custom_call.1} parent=43 // pred_region
          %s860 = smul.u32 4, %s33
          %s862 = ssub.s32 512, 512
          %863 = vsyncadd %s853, %s862
          %s864 = smul.addr %s860, 128
          %s865 = scalar_lea.hbm %s7, %s864
          %s866 = sshll.u32 %s856, 4
          %s867 = int_to_ptr.vmem [resolvable:$true] %s866
          %872 = dma.vmem_to_hbm [thread:$0]  %s867, 512, %s865, %s853, 128, 128, 8
        $region56: #{tpu_custom_call.1} parent=43 // pred_fallthru
          _
      $region44: #{tpu_custom_call.1} parent=5 // pred_fallthru
        _
      %p873 = scmp.le.s32.totalorder 2, %s28
      // Predicated region
      $region57: #{tpu_custom_call.1} parent=5 // pred_check
        %p874 = pneg %p873
      $region58: #{tpu_custom_call.1} parent=5 // pred_check_branch
        %876 = sbr.rel (%p874) target = $region60
      $region59: #{tpu_custom_call.1} parent=5 // pred_region
        %s877 = ssub.s32 %s28, 2
        // Predicated region
        $region61: #{tpu_custom_call.1} parent=59 // pred_check
          %p878 = pneg %p223
        $region62: #{tpu_custom_call.1} parent=59 // pred_check_branch
          %880 = sbr.rel (%p878) target = $region64
        $region63: #{tpu_custom_call.1} parent=59 // pred_region
          %s881 = sand.u32 %s208, 1
          %s882 = scalar_lea.sflag [#allocation6], %s881
          %s883 = sand.u32 %s208, 1
          %s884 = smul.addr %s883, 32
          %s885 = scalar_lea.vmem [#allocation9], %s884
          %886 = dma.done %s882, 512
        $region64: #{tpu_custom_call.1} parent=59 // pred_fallthru
          _
      $region60: #{tpu_custom_call.1} parent=5 // pred_fallthru
        _
    $region6: #{tpu_custom_call.1} parent=1 // loop_footer
      %s32 = sadd.s32 1, %s28
    $region7: #{tpu_custom_call.1} parent=1 // loop_footer_branch
      %27 = sbr.rel target = $region3
    $region8: #{tpu_custom_call.1} parent=1 // loop_exit
      _
    %887 = vsyncpa [#allocation5], 1
    %s888 = scalar_lea.sflag [#allocation5], 1
    %889 = vsyncpa %s888, 1
    %890 = vsyncpa [#allocation8], 1
    %s891 = scalar_lea.sflag [#allocation8], 1
    %892 = vsyncpa %s891, 1
    %893 = vsyncpa [#allocation6], 1
    %s894 = scalar_lea.sflag [#allocation6], 1
    %895 = vsyncpa %s894, 1

</llo_original>
